<compile_context>
chip_gen: v7x
topology: tpu7x:2x2x1
jax: 0.10.0
libtpu: 0.0.40
codegen_flags: <defaults>
</compile_context>

<pallas_src>
import functools

import jax
import jax.numpy as jnp
from jax.experimental import pallas as pl
from jax.experimental.pallas import tpu as pltpu


def _round_up(x, m):
    return (x + m - 1) // m * m


def _default_tile_h(oh, w_pad, kw):
    # (a) keep kw shifted copies of the halo'd window plus the accumulator
    #     near vreg-resident (~48 of the 64 x 4 KiB vregs) so taps don't
    #     round-trip VMEM,
    # (b) leave ~8+ grid steps when the image allows it (feeds the store
    #     pipeline and both v7x TensorCores).
    per_row_bytes = (kw + 1) * w_pad * 4
    cap_vreg = max(8, (48 * 4096) // per_row_bytes)
    cap_split = max(8, -(-oh // 8))          # cdiv(oh, 8)
    t = max(8, min(cap_vreg, cap_split, 512))
    return _round_up(min(t, max(oh, 1)), 8)


def _corr2d_kernel(x_ref, w_ref, b_ref, o_ref, *, kh, kw, tile_h):
    """One output-row tile of cross-correlation + bias.

    x_ref: [h_in_pad, w_pad] f32, fully VMEM-resident padded image (1 copy).
    w_ref: [kh*kw]           f32, SMEM (flattened kernel).
    b_ref: [1]               f32, SMEM.
    o_ref: [tile_h, out_w]   f32 output tile (out_w = w_pad or exact ow).
    """
    i = pl.program_id(0)
    w_pad = x_ref.shape[1]
    out_w = o_ref.shape[1]
    rows = tile_h + kh - 1                       # minimal halo (kh - 1 rows)

    # Single aligned load of this tile's input window (incl. halo rows).
    row0 = pl.multiple_of(i * tile_h, 8)         # tile_h is a multiple of 8
    xv = x_ref[pl.ds(row0, rows), :].astype(jnp.float32)

    # Hoisted lane shifts: kw - 1 XLU roll passes total (not kh * (kw - 1)).
    # Wrapped columns land at j >= ow, outside the stored/valid output region.
    shifted = [xv]
    for kj in range(1, kw):
        shifted.append(pltpu.roll(xv, shift=w_pad - kj, axis=1))

    # Scalars out of SMEM once; accumulator seeded with the bias.
    wts = [w_ref[t] for t in range(kh * kw)]
    acc = jnp.full((tile_h, w_pad), b_ref[0], dtype=jnp.float32)

    # TODO(synk): for very large tile_h restructure this into an unrolled
    # lax.fori_loop over 8-row groups to bound vreg live ranges (v7x).
    for ki in range(kh):                         # static unroll
        for kj in range(kw):                     # static unroll
            acc = acc + shifted[kj][ki:ki + tile_h, :] * wts[ki * kw + kj]

    o_ref[...] = acc[:, :out_w]


def conv2d_pallas(x, weight, bias, *, tile_h=None):
    """Equivalent of Conv2D.forward: corr2d(x, weight) + bias (valid conv)."""
    H, W = x.shape
    kh, kw = weight.shape
    oh, ow = H - kh + 1, W - kw + 1
    w_pad = _round_up(max(W, 1), 128)            # lane-dense input width

    if tile_h is None:
        tile_h = _default_tile_h(oh, w_pad, kw)
    tile_h = max(8, _round_up(int(tile_h), 8))   # 8-alignment is required
    tile_h = min(tile_h, _round_up(oh, 8))

    num_tiles = pl.cdiv(oh, tile_h)
    h_in_pad = num_tiles * tile_h + (kh - 1)     # minimal row halo, >= H

    x_p = jnp.pad(x.astype(jnp.float32), ((0, h_in_pad - H), (0, w_pad - W)))
    w_flat = weight.astype(jnp.float32).reshape(-1)
    b = bias.astype(jnp.float32).reshape(1)

    # Tiny ow: lane-dense (128-padded) stores + cheap wrapper column slice.
    # Larger ow: store at exact width (block last dim == full array dim), so
    # only the final partial lane tile is a masked vst and no slice is needed.
    lane_dense = ow < 128
    out_w = w_pad if lane_dense else ow

    # VMEM budget: single resident input copy + double-buffered output tiles.
    x_bytes = h_in_pad * w_pad * 4
    out_tile_bytes = tile_h * _round_up(out_w, 128) * 4
    needed = x_bytes + 2 * out_tile_bytes + (2 << 20)
    try:
        info = pltpu.get_tpu_info()
        cap = int(0.85 * getattr(info, "vmem_capacity_bytes", 64 * 1024 * 1024))
    except Exception:
        cap = 48 * 1024 * 1024
    # TODO(synk): when `needed` exceeds `cap` (very large images, esp. v7x's
    # 64 MiB/TC), switch to a streamed halo-window input (memory_space=pl.ANY
    # + manual make_async_copy double-buffering) instead of a resident image.
    vmem_limit = int(min(max(needed, 32 * 1024 * 1024), cap))

    cost = pl.CostEstimate(
        flops=2 * oh * ow * kh * kw,
        transcendentals=0,
        bytes_accessed=x_bytes + oh * out_w * 4,
    )

    kernel = functools.partial(_corr2d_kernel, kh=kh, kw=kw, tile_h=tile_h)

    out = pl.pallas_call(
        kernel,
        out_shape=jax.ShapeDtypeStruct((oh, out_w), jnp.float32),
        grid=(num_tiles,),
        in_specs=[
            # Whole image resident in VMEM, single copy (no double-buffering).
            pl.BlockSpec(memory_space=pltpu.MemorySpace.VMEM),
            pl.BlockSpec(memory_space=pltpu.MemorySpace.SMEM),   # flat weight
            pl.BlockSpec(memory_space=pltpu.MemorySpace.SMEM),   # bias
        ],
        out_specs=pl.BlockSpec((tile_h, out_w), lambda i: (i, 0)),
        compiler_params=pltpu.CompilerParams(
            dimension_semantics=("parallel",),
            vmem_limit_bytes=vmem_limit,
        ),
        cost_estimate=cost,
    )(x_p, w_flat, b)

    return out[:, :ow] if lane_dense else out


def conv2d_reference(x, weight, bias):
    """Pure-JAX reference of corr2d + bias for correctness checking."""
    kh, kw = weight.shape
    oh, ow = x.shape[0] - kh + 1, x.shape[1] - kw + 1
    acc = jnp.zeros((oh, ow), jnp.float32)
    for ki in range(kh):
        for kj in range(kw):
            acc = acc + x[ki:ki + oh, kj:kj + ow] * weight[ki, kj]
    return acc + bias[0]


if __name__ == "__main__":
    key = jax.random.PRNGKey(0)
    kx, kw_, kx2 = jax.random.split(key, 3)

    # Primary test: shapes matching the module's forward (2-D image, (3,3) kernel).
    H, W = 16, 16
    kernel_size = (3, 3)
    x = jax.random.uniform(kx, (H, W), dtype=jnp.float32)
    weight = jax.random.uniform(kw_, kernel_size, dtype=jnp.float32)  # ~ th.rand
    bias = jnp.zeros((1,), dtype=jnp.float32)

    out = jax.block_until_ready(conv2d_pallas(x, weight, bias))
    ref = conv2d_reference(x, weight, bias)
    assert out.shape == (H - kernel_size[0] + 1, W - kernel_size[1] + 1)
    assert jnp.allclose(out, ref, atol=1e-5, rtol=1e-5)

    # Secondary test: exercises the multi-tile grid (partial last row block),
    # the minimal kh-1 halo, and the full-width (ow >= 128) store path.
    H2, W2 = 48, 144
    x2 = jax.random.uniform(kx2, (H2, W2), dtype=jnp.float32)
    out2 = jax.block_until_ready(conv2d_pallas(x2, weight, bias, tile_h=8))
    ref2 = conv2d_reference(x2, weight, bias)
    assert out2.shape == ref2.shape
    assert jnp.allclose(out2, ref2, atol=1e-5, rtol=1e-5)

    print("KERNEL_OK")
</pallas_src>

<mosaic_0001>
module attributes {stable_mosaic.version = 11 : i64} {
  func.func @_corr2d_kernel(%arg0: i32, %arg1: memref<18x128xf32, #tpu.memory_space<vmem>>, %arg2: memref<9xf32, #tpu.memory_space<smem>>, %arg3: memref<1xf32, #tpu.memory_space<smem>>, %arg4: memref<8x128xf32, #tpu.memory_space<vmem>>) attributes {dimension_semantics = [#tpu.dimension_semantics<parallel>], iteration_bounds = array<i64: 2>, scalar_prefetch = 0 : i64, scratch_operands = 0 : i64, tpu.core_type = #tpu.core_type<tc>, window_params = [{pipeline_mode = #tpu.pipeline_mode<synchronous>, transform_indices = @transform_0, window_bounds = array<i64: 18, 128>}, {transform_indices = @transform_1, window_bounds = array<i64: 9>}, {transform_indices = @transform_2, window_bounds = array<i64: 1>}, {transform_indices = @transform_3, window_bounds = array<i64: 8, 128>}]} {
    %c8_i32 = arith.constant 8 : i32
    %0 = arith.muli %arg0, %c8_i32 : i32
    %1 = tpu.assume_multiple %0, 8 : i32
    %2 = arith.index_cast %1 : i32 to index
    %c0 = arith.constant 0 : index
    %3 = vector.load %arg1[%2, %c0] : memref<18x128xf32, #tpu.memory_space<vmem>>, vector<10x128xf32>
    %c127_i32 = arith.constant 127 : i32
    %4 = tpu.dynamic_rotate %3 by %c127_i32 dim 1 : vector<10x128xf32>, i32 -> vector<10x128xf32>
    %c126_i32 = arith.constant 126 : i32
    %5 = tpu.dynamic_rotate %3 by %c126_i32 dim 1 : vector<10x128xf32>, i32 -> vector<10x128xf32>
    %c0_0 = arith.constant 0 : index
    %6 = memref.load %arg2[%c0_0] : memref<9xf32, #tpu.memory_space<smem>>
    %c1 = arith.constant 1 : index
    %7 = memref.load %arg2[%c1] : memref<9xf32, #tpu.memory_space<smem>>
    %c2 = arith.constant 2 : index
    %8 = memref.load %arg2[%c2] : memref<9xf32, #tpu.memory_space<smem>>
    %c3 = arith.constant 3 : index
    %9 = memref.load %arg2[%c3] : memref<9xf32, #tpu.memory_space<smem>>
    %c4 = arith.constant 4 : index
    %10 = memref.load %arg2[%c4] : memref<9xf32, #tpu.memory_space<smem>>
    %c5 = arith.constant 5 : index
    %11 = memref.load %arg2[%c5] : memref<9xf32, #tpu.memory_space<smem>>
    %c6 = arith.constant 6 : index
    %12 = memref.load %arg2[%c6] : memref<9xf32, #tpu.memory_space<smem>>
    %c7 = arith.constant 7 : index
    %13 = memref.load %arg2[%c7] : memref<9xf32, #tpu.memory_space<smem>>
    %c8 = arith.constant 8 : index
    %14 = memref.load %arg2[%c8] : memref<9xf32, #tpu.memory_space<smem>>
    %c0_1 = arith.constant 0 : index
    %15 = memref.load %arg3[%c0_1] : memref<1xf32, #tpu.memory_space<smem>>
    %16 = vector.broadcast %15 : f32 to vector<8x128xf32>
    %17 = vector.extract_strided_slice %3 {offsets = [0, 0], sizes = [8, 128], strides = [1, 1]} : vector<10x128xf32> to vector<8x128xf32>
    %18 = vector.broadcast %6 : f32 to vector<8x128xf32>
    %19 = arith.mulf %17, %18 : vector<8x128xf32>
    %20 = arith.addf %16, %19 : vector<8x128xf32>
    %21 = vector.extract_strided_slice %4 {offsets = [0, 0], sizes = [8, 128], strides = [1, 1]} : vector<10x128xf32> to vector<8x128xf32>
    %22 = vector.broadcast %7 : f32 to vector<8x128xf32>
    %23 = arith.mulf %21, %22 : vector<8x128xf32>
    %24 = arith.addf %20, %23 : vector<8x128xf32>
    %25 = vector.extract_strided_slice %5 {offsets = [0, 0], sizes = [8, 128], strides = [1, 1]} : vector<10x128xf32> to vector<8x128xf32>
    %26 = vector.broadcast %8 : f32 to vector<8x128xf32>
    %27 = arith.mulf %25, %26 : vector<8x128xf32>
    %28 = arith.addf %24, %27 : vector<8x128xf32>
    %29 = vector.extract_strided_slice %3 {offsets = [1, 0], sizes = [8, 128], strides = [1, 1]} : vector<10x128xf32> to vector<8x128xf32>
    %30 = vector.broadcast %9 : f32 to vector<8x128xf32>
    %31 = arith.mulf %29, %30 : vector<8x128xf32>
    %32 = arith.addf %28, %31 : vector<8x128xf32>
    %33 = vector.extract_strided_slice %4 {offsets = [1, 0], sizes = [8, 128], strides = [1, 1]} : vector<10x128xf32> to vector<8x128xf32>
    %34 = vector.broadcast %10 : f32 to vector<8x128xf32>
    %35 = arith.mulf %33, %34 : vector<8x128xf32>
    %36 = arith.addf %32, %35 : vector<8x128xf32>
    %37 = vector.extract_strided_slice %5 {offsets = [1, 0], sizes = [8, 128], strides = [1, 1]} : vector<10x128xf32> to vector<8x128xf32>
    %38 = vector.broadcast %11 : f32 to vector<8x128xf32>
    %39 = arith.mulf %37, %38 : vector<8x128xf32>
    %40 = arith.addf %36, %39 : vector<8x128xf32>
    %41 = vector.extract_strided_slice %3 {offsets = [2, 0], sizes = [8, 128], strides = [1, 1]} : vector<10x128xf32> to vector<8x128xf32>
    %42 = vector.broadcast %12 : f32 to vector<8x128xf32>
    %43 = arith.mulf %41, %42 : vector<8x128xf32>
    %44 = arith.addf %40, %43 : vector<8x128xf32>
    %45 = vector.extract_strided_slice %4 {offsets = [2, 0], sizes = [8, 128], strides = [1, 1]} : vector<10x128xf32> to vector<8x128xf32>
    %46 = vector.broadcast %13 : f32 to vector<8x128xf32>
    %47 = arith.mulf %45, %46 : vector<8x128xf32>
    %48 = arith.addf %44, %47 : vector<8x128xf32>
    %49 = vector.extract_strided_slice %5 {offsets = [2, 0], sizes = [8, 128], strides = [1, 1]} : vector<10x128xf32> to vector<8x128xf32>
    %50 = vector.broadcast %14 : f32 to vector<8x128xf32>
    %51 = arith.mulf %49, %50 : vector<8x128xf32>
    %52 = arith.addf %48, %51 : vector<8x128xf32>
    %c0_2 = arith.constant 0 : index
    %c0_3 = arith.constant 0 : index
    %53 = vector.load %arg4[%c0_2, %c0_3] : memref<8x128xf32, #tpu.memory_space<vmem>>, vector<8x128xf32>
    tpu.vector_store %arg4[%c0_2, %c0_3], %52 {strides = array<i32>} : memref<8x128xf32, #tpu.memory_space<vmem>>, vector<8x128xf32>,
    return
  }
  func.func @transform_0(%arg0: i32) -> (i32, i32) {
    %c0_i32 = arith.constant 0 : i32
    %c0_i32_0 = arith.constant 0 : i32
    %c0_i32_1 = arith.constant 0 : i32
    return %c0_i32, %c0_i32_0 : i32, i32
  }
  func.func @transform_1(%arg0: i32) -> i32 {
    %c0_i32 = arith.constant 0 : i32
    %c0_i32_0 = arith.constant 0 : i32
    return %c0_i32 : i32
  }
  func.func @transform_2(%arg0: i32) -> i32 {
    %c0_i32 = arith.constant 0 : i32
    %c0_i32_0 = arith.constant 0 : i32
    return %c0_i32 : i32
  }
  func.func @transform_3(%arg0: i32) -> (i32, i32) {
    %c0_i32 = arith.constant 0 : i32
    %c0_i32_0 = arith.constant 0 : i32
    return %arg0, %c0_i32 : i32, i32
  }
}

</mosaic_0001>

<llo_original>
// kernel: tpu_custom_call.1
$region0: #{tpu_custom_call.1}
  #allocation0 [shape = 'u32[]', space=smem, size = 0x4, offset = 0x4, fixed_abs, tag = 'smem constant byte address 0x4 - core index']
  #allocation1 [shape = 'u32[144,128]{1,0:T(1,128)}', space=vmem, size = 0x12000, scoped, tag = 'internal scratch']
  #allocation2 [shape = 'f32[1]{0:T(128)S(6)}', space=smem, size = 0x200, scoped, tag = 'scoped memory for tpu_custom_call.1']
  %s0 = inlined_call_operand.hbm [shape: f32[18,128], index: 0, kind: input, shape index: {}]
  %s1 = inlined_call_operand.vmem [shape: f32[9], index: 1, kind: input, shape index: {}]
  %s2 = inlined_call_operand.<no memory space> [shape: f32[1], index: 2, kind: input, shape index: {}]
  %s3 = inlined_call_operand.hbm [shape: f32[14,128], index: 3, kind: output, shape index: {}]
  %s4 = sld [smem:[#allocation0]]
  $region53: #{tpu_custom_call.1} parent=0
    _
  %s6 = ssub.s32 1, %s4
  %s7 = scalar_select 0, %s6, %s4
  %8 = sst [smem:[#allocation2]] %s2
  $region1: #{tpu_custom_call.1} parent=0
    #allocation3 [shape = 'u8[12288]{0}', space=vmem, size = 0x3000, scoped, tag = 'input window, operand 0, single buffered']
    #allocation4 [shape = 's32[2]{0}', space=sflag, size = 0x8, scoped, tag = 'scoped memory for tpu_custom_call.1']
    #allocation5 [shape = 's32[2]{0}', space=sflag, size = 0x8, scoped, tag = 'scoped memory for tpu_custom_call.1']
    #allocation6 [shape = 's32[2]{0}', space=sflag, size = 0x8, scoped, tag = 'scoped memory for tpu_custom_call.1']
    #allocation7 [shape = 'u8[512]{0}', space=smem, size = 0x200, scoped, tag = 'input window, operand 1, single buffered']
    #allocation8 [shape = 'u8[8192]{0}', space=vmem, size = 0x2000, scoped, tag = 'output window, operand 0']
    %9 = vsyncpa [#allocation4], 0
    %10 = vsyncpa [#allocation6], 0
    %11 = vsyncpa [#allocation5], 0
    %s12 = scalar_lea.sflag [#allocation5], 1
    %13 = vsyncpa %s12, 0
    loop: start=0, step=1, limit=4
    $region2: #{tpu_custom_call.1} parent=1 // loop_pre_header
      _
    $region3: #{tpu_custom_call.1} parent=1 // loop_header
      %s15 = sphi 0, %s19
      %p16 = scmp.ge.s32.totalorder %s15, 4
      %s23 = sphi 0, %s23
      %s25 = sphi 0, %s23
      %s26 = sphi 0, %s25
      %s40 = sphi 0, %s26
      %s44 = sphi 0, %s44
      %s46 = sphi 0, %s44
      %s47 = sphi 0, %s46
      %s61 = sphi 0, %s47
      %s65 = sphi 0, %s65
      %s67 = sphi 0, %s65
      %s68 = sphi 0, %s67
      %s82 = sphi 0, %s68
      %s88 = sphi 0, %s90
      %s91 = sphi 0, %s88
      %s92 = sphi 0, %s91
      %s108 = sphi 0, %s92
    $region4: #{tpu_custom_call.1} parent=1 // loop_header_branch
      %18 = sbr.rel (%p16) target = $region8
    $region5: #{tpu_custom_call.1} parent=1 // loop_body
      %s20 = ssub.s32 %s15, 1
      %s21 = ssub.s32 %s15, 2
      %s22 = sadd.s32 %s15, 1
      %s24 = sadd.s32 %s23, 1
      %p27 = scmp.eq.s32.totalorder %s15, 1
      %p28 = scmp.ne.s32.totalorder %s23, %s25
      %p29 = scmp.eq.s32.totalorder %s15, 0
      %p30 = por %p28, %p29
      %p31 = scmp.ne.s32.totalorder %s23, %s25
      %p32 = scmp.eq.s32.totalorder %s20, 1
      %p33 = por %p31, %p32
      %p34 = scmp.ne.s32.totalorder %s25, %s26
      %p35 = scmp.eq.s32.totalorder %s20, 0
      %p36 = por %p34, %p35
      %p37 = scmp.ne.s32.totalorder %s25, %s26
      %p38 = scmp.eq.s32.totalorder %s21, 1
      %p39 = por %p37, %p38
      %p41 = scmp.ne.s32.totalorder %s26, %s40
      %p42 = scmp.eq.s32.totalorder %s21, 0
      %p43 = por %p41, %p42
      %s45 = sadd.s32 %s44, 1
      %p48 = scmp.eq.s32.totalorder %s15, 1
      %p49 = scmp.ne.s32.totalorder %s44, %s46
      %p50 = scmp.eq.s32.totalorder %s15, 0
      %p51 = por %p49, %p50
      %p52 = scmp.ne.s32.totalorder %s44, %s46
      %p53 = scmp.eq.s32.totalorder %s20, 1
      %p54 = por %p52, %p53
      %p55 = scmp.ne.s32.totalorder %s46, %s47
      %p56 = scmp.eq.s32.totalorder %s20, 0
      %p57 = por %p55, %p56
      %p58 = scmp.ne.s32.totalorder %s46, %s47
      %p59 = scmp.eq.s32.totalorder %s21, 1
      %p60 = por %p58, %p59
      %p62 = scmp.ne.s32.totalorder %s47, %s61
      %p63 = scmp.eq.s32.totalorder %s21, 0
      %p64 = por %p62, %p63
      %s66 = sadd.s32 %s65, 1
      %p69 = scmp.eq.s32.totalorder %s15, 1
      %p70 = scmp.ne.s32.totalorder %s65, %s67
      %p71 = scmp.eq.s32.totalorder %s15, 0
      %p72 = por %p70, %p71
      %p73 = scmp.ne.s32.totalorder %s65, %s67
      %p74 = scmp.eq.s32.totalorder %s20, 1
      %p75 = por %p73, %p74
      %p76 = scmp.ne.s32.totalorder %s67, %s68
      %p77 = scmp.eq.s32.totalorder %s20, 0
      %p78 = por %p76, %p77
      %p79 = scmp.ne.s32.totalorder %s67, %s68
      %p80 = scmp.eq.s32.totalorder %s21, 1
      %p81 = por %p79, %p80
      %p83 = scmp.ne.s32.totalorder %s68, %s82
      %p84 = scmp.eq.s32.totalorder %s21, 0
      %p85 = por %p83, %p84
      %s86 = ssub.s32 %s15, %s22
      %p87 = scmp.eq.s32.totalorder %s86, 0
      %s89 = sadd.s32 %s88, 1
      %s90 = scalar_select %p87, %s88, %s89
      %p93 = pneg %p87
      %p94 = scmp.eq.s32.totalorder %s15, 1
      %p95 = por %p93, %p94
      %p96 = scmp.ne.s32.totalorder %s88, %s91
      %p97 = scmp.eq.s32.totalorder %s15, 0
      %p98 = por %p96, %p97
      %p99 = scmp.ne.s32.totalorder %s88, %s91
      %p100 = scmp.eq.s32.totalorder %s20, 1
      %p101 = por %p99, %p100
      %p102 = scmp.ne.s32.totalorder %s91, %s92
      %p103 = scmp.eq.s32.totalorder %s20, 0
      %p104 = por %p102, %p103
      %p105 = scmp.ne.s32.totalorder %s91, %s92
      %p106 = scmp.eq.s32.totalorder %s21, 1
      %p107 = por %p105, %p106
      %p109 = scmp.ne.s32.totalorder %s92, %s108
      %p110 = scmp.eq.s32.totalorder %s21, 0
      %p111 = por %p109, %p110
      %p112 = scmp.le.s32.totalorder 1, %s15
      %p113 = scmp.lt.s32.totalorder %s15, 3
      %p114 = pnand %p112, %p113
      %p115 = pneg %p114
      // Predicated region
      $region9: #{tpu_custom_call.1} parent=5 // pred_check
        _
      $region10: #{tpu_custom_call.1} parent=5 // pred_check_branch
        %117 = sbr.rel (%p114) target = $region12
      $region11: #{tpu_custom_call.1} parent=5 // pred_region
        %s118 = ssub.s32 %s15, 1
        // Predicated region
        $region13: #{tpu_custom_call.1} parent=11 // pred_check
          %p119 = pneg %p36
        $region14: #{tpu_custom_call.1} parent=11 // pred_check_branch
          %121 = sbr.rel (%p119) target = $region16
        $region15: #{tpu_custom_call.1} parent=11 // pred_region
          %s123 = ssub.s32 384, 384
          %124 = vsyncadd [#allocation4], %s123
          %s125 = sshll.u32 [#allocation3], 4
          %s126 = int_to_ptr.vmem [resolvable:$true] %s125
          %131 = dma.hbm_to_vmem [thread:$0]  %s0, 384, %s126, [#allocation4], 128, 128, 8
        $region16: #{tpu_custom_call.1} parent=11 // pred_fallthru
          _
        // Predicated region
        $region17: #{tpu_custom_call.1} parent=11 // pred_check
          %p132 = pneg %p57
        $region18: #{tpu_custom_call.1} parent=11 // pred_check_branch
          %134 = sbr.rel (%p132) target = $region20
        $region19: #{tpu_custom_call.1} parent=11 // pred_region
          %s136 = ssub.s32 16, 16
          %137 = vsyncadd [#allocation6], %s136
          %s139 = sshll.u32 %s1, 4
          %s140 = int_to_ptr.vmem [resolvable:$true] %s139
          %142 = dma.vmem_to_smem %s140, 16, [#allocation7], [#allocation6]
        $region20: #{tpu_custom_call.1} parent=11 // pred_fallthru
          _
        // Predicated region
        $region21: #{tpu_custom_call.1} parent=11 // pred_check
          %p143 = pneg %p78
        $region22: #{tpu_custom_call.1} parent=11 // pred_check_branch
          %145 = sbr.rel (%p143) target = $region24
        $region23: #{tpu_custom_call.1} parent=11 // pred_region
          _
        $region24: #{tpu_custom_call.1} parent=11 // pred_fallthru
          _
      $region12: #{tpu_custom_call.1} parent=5 // pred_fallthru
        _
      %p146 = scmp.lt.s32.totalorder %s15, 2
      // Predicated region
      $region25: #{tpu_custom_call.1} parent=5 // pred_check
        %p147 = pneg %p146
      $region26: #{tpu_custom_call.1} parent=5 // pred_check_branch
        %149 = sbr.rel (%p147) target = $region28
      $region27: #{tpu_custom_call.1} parent=5 // pred_region
        _
      $region28: #{tpu_custom_call.1} parent=5 // pred_fallthru
        _
      %p150 = scmp.le.s32.totalorder 1, %s15
      %p151 = scmp.lt.s32.totalorder %s15, 3
      %p152 = pnand %p150, %p151
      %p153 = pneg %p152
      // Predicated region
      $region29: #{tpu_custom_call.1} parent=5 // pred_check
        _
      $region30: #{tpu_custom_call.1} parent=5 // pred_check_branch
        %155 = sbr.rel (%p152) target = $region32
      $region31: #{tpu_custom_call.1} parent=5 // pred_region
        %s156 = ssub.s32 %s15, 1
        // Predicated region
        $region33: #{tpu_custom_call.1} parent=31 // pred_check
          %p157 = pneg %p36
        $region34: #{tpu_custom_call.1} parent=31 // pred_check_branch
          %159 = sbr.rel (%p157) target = $region36
        $region35: #{tpu_custom_call.1} parent=31 // pred_region
          %160 = dma.done [#allocation4], 384
        $region36: #{tpu_custom_call.1} parent=31 // pred_fallthru
          _
        // Predicated region
        $region37: #{tpu_custom_call.1} parent=31 // pred_check
          %p161 = pneg %p57
        $region38: #{tpu_custom_call.1} parent=31 // pred_check_branch
          %163 = sbr.rel (%p161) target = $region40
        $region39: #{tpu_custom_call.1} parent=31 // pred_region
          %164 = dma.done [#allocation6], 16
        $region40: #{tpu_custom_call.1} parent=31 // pred_fallthru
          _
        %165 = sfence
        %p166 = pneg %p36
        %p167 = pneg %p33
        %p168 = pneg %p57
        %p169 = pneg %p54
        %p170 = pneg %p78
        %p171 = pneg %p75
        %p172 = pneg %p104
        %p173 = pneg %p101
        %s174 = sand.u32 %s91, 1
        %s175 = scalar_lea.sflag [#allocation5], %s174
        %s176 = sand.u32 %s91, 1
        %s177 = smul.addr %s176, 8
        %s178 = scalar_lea.vmem [#allocation8], %s177
        %s179 = smul.u32 %s20, 8
        %s180 = scalar_lea.vmem [#allocation3], %s179
        %v181 = vld [vmem:[%s180] sm:$0xff]
        %v182 = vld [vmem:[%s180 + $0x8] sm:$0x3]
        %183 = vrot.lane.b32.xlu0 %v181, 127
        %v184 = vpop.permute.xlu0 %183
        %185 = vrot.lane.b32.xlu0 %v182, 127
        %v186 = vpop.permute.xlu0 %185
        %187 = vrot.lane.b32.xlu0 %v181, 126
        %v188 = vpop.permute.xlu0 %187
        %189 = vrot.lane.b32.xlu0 %v182, 126
        %v190 = vpop.permute.xlu0 %189
        %s191 = sld [smem:[#allocation7]]
        %s192 = sld [smem:[#allocation7 + $0x1]]
        %s193 = sld [smem:[#allocation7 + $0x2]]
        %s194 = sld [smem:[#allocation7 + $0x3]]
        %s195 = sld [smem:[#allocation7 + $0x4]]
        %s196 = sld [smem:[#allocation7 + $0x5]]
        %s197 = sld [smem:[#allocation7 + $0x6]]
        %s198 = sld [smem:[#allocation7 + $0x7]]
        %s199 = sld [smem:[#allocation7 + $0x8]]
        %s200 = sld [smem:[#allocation2]]
        %v201 = vstv %s200
        %v202 = vstv %s191
        %v203 = vmul.f32 %v181, %v202
        %v204 = vadd.f32 %v201, %v203
        %v205 = vstv %s192
        %v206 = vmul.f32 %v184, %v205
        %v207 = vadd.f32 %v204, %v206
        %v208 = vstv %s193
        %v209 = vmul.f32 %v188, %v208
        %v210 = vadd.f32 %v207, %v209
        %v211 = vstv %s194
        %v212 = vmul.f32 %v181, %v211
        %v213 = vmul.f32 %v182, %v211
        %vm216 = vcmask 1046528
        %v217 = vrot.slane %v212, 1
        %v218 = vrot.slane %v213, 1
        %v219 = vsel %vm216, %v217, %v218
        %v221 = vadd.f32 %v210, %v219
        %v222 = vstv %s195
        %v223 = vmul.f32 %v184, %v222
        %v224 = vmul.f32 %v186, %v222
        %v227 = vrot.slane %v223, 1
        %v228 = vrot.slane %v224, 1
        %v229 = vsel %vm216, %v227, %v228
        %v231 = vadd.f32 %v221, %v229
        %v232 = vstv %s196
        %v233 = vmul.f32 %v188, %v232
        %v234 = vmul.f32 %v190, %v232
        %v237 = vrot.slane %v233, 1
        %v238 = vrot.slane %v234, 1
        %v239 = vsel %vm216, %v237, %v238
        %v241 = vadd.f32 %v231, %v239
        %v242 = vstv %s197
        %v243 = vmul.f32 %v181, %v242
        %v244 = vmul.f32 %v182, %v242
        %vm247 = vcmask 1045504
        %v248 = vrot.slane %v243, 2
        %v249 = vrot.slane %v244, 2
        %v250 = vsel %vm247, %v248, %v249
        %v252 = vadd.f32 %v241, %v250
        %v253 = vstv %s198
        %v254 = vmul.f32 %v184, %v253
        %v255 = vmul.f32 %v186, %v253
        %v258 = vrot.slane %v254, 2
        %v259 = vrot.slane %v255, 2
        %v260 = vsel %vm247, %v258, %v259
        %v262 = vadd.f32 %v252, %v260
        %v263 = vstv %s199
        %v264 = vmul.f32 %v188, %v263
        %v265 = vmul.f32 %v190, %v263
        %v268 = vrot.slane %v264, 2
        %v269 = vrot.slane %v265, 2
        %v270 = vsel %vm247, %v268, %v269
        %v272 = vadd.f32 %v262, %v270
        %273 = vst [vmem:[%s178] sm:$0xff] %v272
        %s274 = sand.u32 %s91, 1
        %s275 = scalar_lea.sflag [#allocation5], %s274
        %s276 = sand.u32 %s91, 1
        %s277 = smul.addr %s276, 8
        %s278 = scalar_lea.vmem [#allocation8], %s277
        // Predicated region
        $region41: #{tpu_custom_call.1} parent=31 // pred_check
          %p279 = pneg %p101
        $region42: #{tpu_custom_call.1} parent=31 // pred_check_branch
          %281 = sbr.rel (%p279) target = $region44
        $region43: #{tpu_custom_call.1} parent=31 // pred_region
          %s283 = ssub.s32 128, 128
          %284 = vsyncadd %s275, %s283
          %s285 = smul.addr %s20, 128
          %s286 = scalar_lea.hbm %s3, %s285
          %s288 = sshll.u32 %s278, 4
          %s289 = int_to_ptr.vmem [resolvable:$true] %s288
          %291 = dma.vmem_to_hbm [thread:$0]  %s289, 128, %s286, %s275
        $region44: #{tpu_custom_call.1} parent=31 // pred_fallthru
          _
      $region32: #{tpu_custom_call.1} parent=5 // pred_fallthru
        _
      %p292 = scmp.le.s32.totalorder 2, %s15
      // Predicated region
      $region45: #{tpu_custom_call.1} parent=5 // pred_check
        %p293 = pneg %p292
      $region46: #{tpu_custom_call.1} parent=5 // pred_check_branch
        %295 = sbr.rel (%p293) target = $region48
      $region47: #{tpu_custom_call.1} parent=5 // pred_region
        %s296 = ssub.s32 %s15, 2
        // Predicated region
        $region49: #{tpu_custom_call.1} parent=47 // pred_check
          %p297 = pneg %p107
        $region50: #{tpu_custom_call.1} parent=47 // pred_check_branch
          %299 = sbr.rel (%p297) target = $region52
        $region51: #{tpu_custom_call.1} parent=47 // pred_region
          %s300 = sand.u32 %s92, 1
          %s301 = scalar_lea.sflag [#allocation5], %s300
          %s302 = sand.u32 %s92, 1
          %s303 = smul.addr %s302, 8
          %s304 = scalar_lea.vmem [#allocation8], %s303
          %305 = dma.done %s301, 128
        $region52: #{tpu_custom_call.1} parent=47 // pred_fallthru
          _
      $region48: #{tpu_custom_call.1} parent=5 // pred_fallthru
        _
    $region6: #{tpu_custom_call.1} parent=1 // loop_footer
      %s19 = sadd.s32 1, %s15
    $region7: #{tpu_custom_call.1} parent=1 // loop_footer_branch
      %14 = sbr.rel target = $region3
    $region8: #{tpu_custom_call.1} parent=1 // loop_exit
      _
    %306 = vsyncpa [#allocation4], 1
    %s307 = scalar_lea.sflag [#allocation4], 1
    %308 = vsyncpa %s307, 1
    %309 = vsyncpa [#allocation5], 1
    %s310 = scalar_lea.sflag [#allocation5], 1
    %311 = vsyncpa %s310, 1
    %312 = vsyncpa [#allocation6], 1
    %s313 = scalar_lea.sflag [#allocation6], 1
    %314 = vsyncpa %s313, 1

</llo_original>
